<compile_context>
chip_gen: v7x
topology: tpu7x:2x2x1
jax: 0.10.0
libtpu: 0.0.40
codegen_flags: <defaults>
</compile_context>

<pallas_src>
import functools

import jax
import jax.numpy as jnp
from jax.experimental import pallas as pl
from jax.experimental.pallas import tpu as pltpu


def _vq_kernel(xt_ref, cb_ref, c2h_ref, xqt_ref, idx_ref, loss_ref, *, n_valid):
    """One grid step quantizes a (D, TN) tile of input columns (lane-dense).

    xt_ref  : (D, TN)   f32  input vectors, one per lane column
    cb_ref  : (K, D)    f32  full codebook (same block every step)
    c2h_ref : (K, 1)    f32  0.5 * per-code squared norms (hoisted to wrapper)
    xqt_ref : (D, TN)   f32  quantized vectors (transposed layout)
    idx_ref : (1, TN)   i32  codebook indices (lane-dense)
    loss_ref: (1, 1, 1) f32  per-tile partial sum of squared error
    """
    i = pl.program_id(0)
    tn = xt_ref.shape[1]

    xt = xt_ref[...]                                  # (D, TN)
    cb = cb_ref[...]                                  # (K, D)
    k = cb.shape[0]

    # Argmin-equivalent distance surrogate: 0.5*|c|^2 - c.x  -> (K, TN).
    # (|x|^2 is constant per column; the overall factor 2 is folded away.)
    dots = jax.lax.dot_general(                       # cb @ xt  (K, TN)
        cb, xt, (((1,), (0,)), ((), ())),
        preferred_element_type=jnp.float32)
    dist = c2h_ref[...] - dots                        # (K, TN)

    # argmin over K (lowest index wins ties); result is lane-dense (1, TN).
    min_d = jnp.min(dist, axis=0, keepdims=True)                  # (1, TN)
    iota_k = jax.lax.broadcasted_iota(jnp.int32, dist.shape, 0)   # (K, TN)
    idx = jnp.min(jnp.where(dist <= min_d, iota_k, k),
                  axis=0, keepdims=True)                          # (1, TN) i32

    # Gather codebook rows with a one-hot matmul, producing (D, TN) directly.
    onehot = (iota_k == idx).astype(jnp.float32)                  # (K, TN)
    xqt = jax.lax.dot_general(                                    # cb^T @ onehot
        cb, onehot, (((0,), (0,)), ((), ())),
        preferred_element_type=jnp.float32)                       # (D, TN)

    xqt_ref[...] = xqt
    idx_ref[...] = idx

    last = pl.num_programs(0) - 1

    # Full tiles: unmasked partial commitment loss.
    @pl.when(i < last)
    def _():
        diff = xt - xqt
        loss_ref[...] = jnp.sum(diff * diff, keepdims=True)[None]

    # Last tile: mask columns beyond the true N (pad / clipped-block columns).
    @pl.when(i == last)
    def _():
        col = jax.lax.broadcasted_iota(jnp.int32, (1, tn), 1) + i * tn
        diff = jnp.where(col < n_valid, xt - xqt, 0.0)
        loss_ref[...] = jnp.sum(diff * diff, keepdims=True)[None]


@functools.partial(jax.jit, static_argnames=("row_tile",))
def vector_quantize(x, codebook, *, row_tile=8192):
    """Pallas VQ forward.

    x        : (..., D) float-like input vectors (D = order + 1).
    codebook : (K, D)   float-like codebook.
    Returns (xq [..., D] f32, indices [...] i32, loss scalar f32).
    """
    x = x.astype(jnp.float32)
    codebook = codebook.astype(jnp.float32)

    orig_shape = x.shape
    d = orig_shape[-1]
    k = codebook.shape[0]
    lead_shape = orig_shape[:-1]

    x2d = x.reshape((-1, d))
    n = x2d.shape[0]

    assert row_tile % 128 == 0, "row_tile must be a multiple of 128"

    # Lane-dense transposed layout (D, N); pad columns only to a multiple of
    # 128 (<= 127 zero columns, fuses with the transpose copy).
    xt = x2d.T
    n128 = ((n + 127) // 128) * 128
    if n128 != n:
        xt = jnp.pad(xt, ((0, 0), (0, n128 - n)))

    tile = min(row_tile, n128)
    num_tiles = int(pl.cdiv(n128, tile))

    # Codebook-derived constant, hoisted out of the kernel (computed once);
    # pre-scaled by 0.5 so the kernel needs no per-step scaling.
    c2_half = 0.5 * jnp.sum(codebook * codebook, axis=-1, keepdims=True)  # (K,1)

    kernel = functools.partial(_vq_kernel, n_valid=n)

    xqt, idx_out, loss_parts = pl.pallas_call(
        kernel,
        out_shape=(
            jax.ShapeDtypeStruct((d, n128), jnp.float32),
            jax.ShapeDtypeStruct((1, n128), jnp.int32),
            jax.ShapeDtypeStruct((num_tiles, 1, 1), jnp.float32),
        ),
        grid_spec=pltpu.PrefetchScalarGridSpec(
            num_scalar_prefetch=0,
            grid=(num_tiles,),
            in_specs=[
                pl.BlockSpec((d, tile), lambda i: (0, i)),         # x (transposed)
                pl.BlockSpec((k, d), lambda i: (0, 0)),            # codebook
                pl.BlockSpec((k, 1), lambda i: (0, 0)),            # 0.5*|c|^2
            ],
            out_specs=[
                pl.BlockSpec((d, tile), lambda i: (0, i)),         # xq (transposed)
                pl.BlockSpec((1, tile), lambda i: (0, i)),         # indices
                pl.BlockSpec((1, 1, 1), lambda i: (i, 0, 0)),      # loss partial
            ],
        ),
        compiler_params=pltpu.CompilerParams(
            # No output block is revisited -> grid axis can be parallel
            # (shards across both TensorCores on v7x; neutral on v5e/v6e).
            dimension_semantics=("parallel",)),
    )(xt, codebook, c2_half)

    # mse_loss(x, stop_grad(xq)) * commitment_weight(=1): mean over all elems.
    loss = jnp.sum(loss_parts) / jnp.float32(n * d)

    xq = xqt[:, :n].T.reshape(orig_shape)
    indices = idx_out[0, :n]
    indices = indices.reshape(lead_shape) if lead_shape else indices[0]
    return xq, indices, loss


if __name__ == "__main__":
    # Module config: order M = 7  ->  dim D = 8, codebook_size K = 16.
    order = 7
    codebook_size = 16
    dim = order + 1

    key = jax.random.PRNGKey(0)
    kx, kc = jax.random.split(key)

    # Deterministic synthetic parameters / inputs.
    # x: batch=2, seq=16, dim=8  (leading dims arbitrary, last dim = M+1)
    x = jax.random.normal(kx, (2, 16, dim), dtype=jnp.float32)
    codebook = jax.random.normal(kc, (codebook_size, dim), dtype=jnp.float32)

    xq, indices, loss = vector_quantize(x, codebook)
    jax.block_until_ready((xq, indices, loss))

    # Cheap sanity check against a pure-JAX reference.
    x2d = x.reshape(-1, dim)
    dist_ref = (jnp.sum(x2d**2, -1, keepdims=True)
                - 2.0 * x2d @ codebook.T
                + jnp.sum(codebook**2, -1)[None, :])
    idx_ref = jnp.argmin(dist_ref, axis=-1).astype(jnp.int32)
    xq_ref = codebook[idx_ref].reshape(x.shape)
    loss_ref = jnp.mean((x - xq_ref) ** 2)

    assert xq.shape == x.shape and indices.shape == x.shape[:-1]
    assert jnp.array_equal(indices.reshape(-1), idx_ref)
    assert jnp.allclose(xq, xq_ref, atol=1e-5)
    assert jnp.allclose(loss, loss_ref, atol=1e-5)

    print("KERNEL_OK")
</pallas_src>

<mosaic_0001>
module attributes {stable_mosaic.version = 11 : i64} {
  func.func @_vq_kernel(%arg0: i32, %arg1: memref<8x128xf32, #tpu.memory_space<vmem>>, %arg2: memref<16x8xf32, #tpu.memory_space<vmem>>, %arg3: memref<16x1xf32, #tpu.memory_space<vmem>>, %arg4: memref<8x128xf32, #tpu.memory_space<vmem>>, %arg5: memref<1x128xi32, #tpu.memory_space<vmem>>, %arg6: memref<1x1x1xf32, #tpu.memory_space<vmem>>) attributes {dimension_semantics = [#tpu.dimension_semantics<parallel>], iteration_bounds = array<i64: 1>, scalar_prefetch = 0 : i64, scratch_operands = 0 : i64, tpu.core_type = #tpu.core_type<tc>, window_params = [{transform_indices = @transform_0, window_bounds = array<i64: 8, 128>}, {pipeline_mode = #tpu.pipeline_mode<synchronous>, transform_indices = @transform_1, window_bounds = array<i64: 16, 8>}, {pipeline_mode = #tpu.pipeline_mode<synchronous>, transform_indices = @transform_2, window_bounds = array<i64: 16, 1>}, {transform_indices = @transform_3, window_bounds = array<i64: 8, 128>}, {transform_indices = @transform_4, window_bounds = array<i64: 1, 128>}, {transform_indices = @transform_5, window_bounds = array<i64: 1, 1, 1>}]} {
    %c0 = arith.constant 0 : index
    %c0_0 = arith.constant 0 : index
    %0 = vector.load %arg1[%c0, %c0_0] : memref<8x128xf32, #tpu.memory_space<vmem>>, vector<8x128xf32>
    %c0_1 = arith.constant 0 : index
    %c0_2 = arith.constant 0 : index
    %1 = vector.load %arg2[%c0_1, %c0_2] : memref<16x8xf32, #tpu.memory_space<vmem>>, vector<16x8xf32>
    %cst = arith.constant dense<0.000000e+00> : vector<16x128xf32>
    %2 = tpu.matmul %1, %0, %cst {dimension_numbers = #tpu.dot_dimension_numbers<[1], [0], [0], [1], [0, 0, 1, 1], [], []>} : vector<16x8xf32>, vector<8x128xf32>, vector<16x128xf32> -> vector<16x128xf32>
    %c0_3 = arith.constant 0 : index
    %c0_4 = arith.constant 0 : index
    %3 = vector.load %arg3[%c0_3, %c0_4] : memref<16x1xf32, #tpu.memory_space<vmem>>, vector<16x1xf32>
    %4 = vector.broadcast %3 : vector<16x1xf32> to vector<16x128xf32>
    %5 = arith.subf %4, %2 : vector<16x128xf32>
    %cst_5 = arith.constant dense<0x7F800000> : vector<128xf32>
    %6 = vector.multi_reduction <minimumf>, %5, %cst_5 [0] : vector<16x128xf32> to vector<128xf32>
    %7 = vector.shape_cast %6 : vector<128xf32> to vector<1x128xf32>
    %8 = tpu.iota {dimensions = array<i32: 0>} : vector<16x128xi32>
    %9 = vector.broadcast %7 : vector<1x128xf32> to vector<16x128xf32>
    %10 = arith.cmpf ole, %5, %9 : vector<16x128xf32>
    %c16_i32 = arith.constant 16 : i32
    %11 = vector.broadcast %c16_i32 : i32 to vector<16x128xi32>
    %12 = arith.select %10, %8, %11 : vector<16x128xi1>, vector<16x128xi32>
    %cst_6 = arith.constant dense<2147483647> : vector<128xi32>
    %13 = vector.multi_reduction <minsi>, %12, %cst_6 [0] : vector<16x128xi32> to vector<128xi32>
    %14 = vector.shape_cast %13 : vector<128xi32> to vector<1x128xi32>
    %15 = vector.broadcast %14 : vector<1x128xi32> to vector<16x128xi32>
    %16 = arith.cmpi eq, %8, %15 : vector<16x128xi32>
    %17 = arith.extui %16 : vector<16x128xi1> to vector<16x128xi32>
    %18 = arith.sitofp %17 : vector<16x128xi32> to vector<16x128xf32>
    %cst_7 = arith.constant dense<0.000000e+00> : vector<8x128xf32>
    %19 = tpu.matmul %1, %18, %cst_7 {dimension_numbers = #tpu.dot_dimension_numbers<[0], [0], [1], [1], [0, 1, 1, 1], [], []>} : vector<16x8xf32>, vector<16x128xf32>, vector<8x128xf32> -> vector<8x128xf32>
    %c0_8 = arith.constant 0 : index
    %c0_9 = arith.constant 0 : index
    %20 = vector.load %arg4[%c0_8, %c0_9] : memref<8x128xf32, #tpu.memory_space<vmem>>, vector<8x128xf32>
    tpu.vector_store %arg4[%c0_8, %c0_9], %19 {strides = array<i32>} : memref<8x128xf32, #tpu.memory_space<vmem>>, vector<8x128xf32>,
    %c0_10 = arith.constant 0 : index
    %c0_11 = arith.constant 0 : index
    %21 = vector.load %arg5[%c0_10, %c0_11] : memref<1x128xi32, #tpu.memory_space<vmem>>, vector<1x128xi32>
    tpu.vector_store %arg5[%c0_10, %c0_11], %14 {strides = array<i32>} : memref<1x128xi32, #tpu.memory_space<vmem>>, vector<1x128xi32>,
    %c0_i32 = arith.constant 0 : i32
    %22 = arith.cmpi slt, %arg0, %c0_i32 : i32
    %23 = arith.extui %22 : i1 to i32
    %c0_i32_12 = arith.constant 0 : i32
    %24 = arith.cmpi ne, %23, %c0_i32_12 : i32
    scf.if %24 {
      %28 = arith.subf %0, %19 : vector<8x128xf32>
      %29 = arith.mulf %28, %28 : vector<8x128xf32>
      %30 = vector.shape_cast %29 : vector<8x128xf32> to vector<1x8x128xf32>
      %cst_15 = arith.constant dense<0.000000e+00> : vector<1xf32>
      %31 = vector.multi_reduction <add>, %30, %cst_15 [1, 2] : vector<1x8x128xf32> to vector<1xf32>
      %32 = vector.shape_cast %31 : vector<1xf32> to vector<1x1x1xf32>
      %33 = vector.extract %32[0, 0, 0] : f32 from vector<1x1x1xf32>
      %34 = vector.broadcast %33 : f32 to vector<1x1xf32>
      %35 = vector.shape_cast %34 : vector<1x1xf32> to vector<1x1x1xf32>
      %c0_16 = arith.constant 0 : index
      %c0_17 = arith.constant 0 : index
      %c0_18 = arith.constant 0 : index
      %36 = vector.load %arg6[%c0_16, %c0_17, %c0_18] : memref<1x1x1xf32, #tpu.memory_space<vmem>>, vector<1x1x1xf32>
      tpu.vector_store %arg6[%c0_16, %c0_17, %c0_18], %35 {strides = array<i32>} : memref<1x1x1xf32, #tpu.memory_space<vmem>>, vector<1x1x1xf32>,
    } else {
    }
    %c0_i32_13 = arith.constant 0 : i32
    %25 = arith.cmpi eq, %arg0, %c0_i32_13 : i32
    %26 = arith.extui %25 : i1 to i32
    %c0_i32_14 = arith.constant 0 : i32
    %27 = arith.cmpi ne, %26, %c0_i32_14 : i32
    scf.if %27 {
      %28 = tpu.iota {dimensions = array<i32: 1>} : vector<1x128xi32>
      %c128_i32 = arith.constant 128 : i32
      %29 = arith.muli %arg0, %c128_i32 : i32
      %30 = vector.broadcast %29 : i32 to vector<1x128xi32>
      %31 = arith.addi %28, %30 : vector<1x128xi32>
      %c32_i32 = arith.constant 32 : i32
      %32 = vector.broadcast %c32_i32 : i32 to vector<1x128xi32>
      %33 = arith.cmpi slt, %31, %32 : vector<1x128xi32>
      %34 = arith.subf %0, %19 : vector<8x128xf32>
      %cst_15 = arith.constant 0.000000e+00 : f32
      %35 = vector.shape_cast %33 : vector<1x128xi1> to vector<1x128xi1>
      %36 = vector.broadcast %35 : vector<1x128xi1> to vector<8x128xi1>
      %37 = vector.broadcast %cst_15 : f32 to vector<8x128xf32>
      %38 = arith.select %36, %34, %37 : vector<8x128xi1>, vector<8x128xf32>
      %39 = arith.mulf %38, %38 : vector<8x128xf32>
      %40 = vector.shape_cast %39 : vector<8x128xf32> to vector<1x8x128xf32>
      %cst_16 = arith.constant dense<0.000000e+00> : vector<1xf32>
      %41 = vector.multi_reduction <add>, %40, %cst_16 [1, 2] : vector<1x8x128xf32> to vector<1xf32>
      %42 = vector.shape_cast %41 : vector<1xf32> to vector<1x1x1xf32>
      %43 = vector.extract %42[0, 0, 0] : f32 from vector<1x1x1xf32>
      %44 = vector.broadcast %43 : f32 to vector<1x1xf32>
      %45 = vector.shape_cast %44 : vector<1x1xf32> to vector<1x1x1xf32>
      %c0_17 = arith.constant 0 : index
      %c0_18 = arith.constant 0 : index
      %c0_19 = arith.constant 0 : index
      %46 = vector.load %arg6[%c0_17, %c0_18, %c0_19] : memref<1x1x1xf32, #tpu.memory_space<vmem>>, vector<1x1x1xf32>
      tpu.vector_store %arg6[%c0_17, %c0_18, %c0_19], %45 {strides = array<i32>} : memref<1x1x1xf32, #tpu.memory_space<vmem>>, vector<1x1x1xf32>,
    } else {
    }
    return
  }
  func.func @transform_0(%arg0: i32) -> (i32, i32) {
    %c0_i32 = arith.constant 0 : i32
    %c0_i32_0 = arith.constant 0 : i32
    return %c0_i32, %arg0 : i32, i32
  }
  func.func @transform_1(%arg0: i32) -> (i32, i32) {
    %c0_i32 = arith.constant 0 : i32
    %c0_i32_0 = arith.constant 0 : i32
    %c0_i32_1 = arith.constant 0 : i32
    return %c0_i32, %c0_i32_0 : i32, i32
  }
  func.func @transform_2(%arg0: i32) -> (i32, i32) {
    %c0_i32 = arith.constant 0 : i32
    %c0_i32_0 = arith.constant 0 : i32
    %c0_i32_1 = arith.constant 0 : i32
    return %c0_i32, %c0_i32_0 : i32, i32
  }
  func.func @transform_3(%arg0: i32) -> (i32, i32) {
    %c0_i32 = arith.constant 0 : i32
    %c0_i32_0 = arith.constant 0 : i32
    return %c0_i32, %arg0 : i32, i32
  }
  func.func @transform_4(%arg0: i32) -> (i32, i32) {
    %c0_i32 = arith.constant 0 : i32
    %c0_i32_0 = arith.constant 0 : i32
    return %c0_i32, %arg0 : i32, i32
  }
  func.func @transform_5(%arg0: i32) -> (i32, i32, i32) {
    %c0_i32 = arith.constant 0 : i32
    %c0_i32_0 = arith.constant 0 : i32
    %c0_i32_1 = arith.constant 0 : i32
    return %arg0, %c0_i32, %c0_i32_0 : i32, i32, i32
  }
}

</mosaic_0001>

<llo_original>
// kernel: squeeze.1
$region0: #{squeeze.1}
  %s0 = inlined_call_operand.vmem [shape: s32[32], index: 0, kind: input, shape index: {}]
  %s1 = inlined_call_operand.hbm [shape: s32[2,16], index: 1, kind: output, shape index: {}]
  $region1: #{squeeze.1} parent=0
    #allocation0 [shape = 'u8[1024]{0}', space=vmem, size = 0x400, scoped, tag = 'operand span for operand 1']
    #allocation1 [shape = 's32[1]{0}', space=sflag, size = 0x4, scoped, tag = 'scoped memory for squeeze.1']
    #allocation2 [shape = 'u8[4096]{0}', space=vmem, size = 0x1000, scoped, tag = 'scoped mem for output reshape']
    #allocation3 [shape = 'u8[4096]{0}', space=vmem, size = 0x1000, scoped, tag = 'scoped mem for input reshape']
    %2 = vsyncpa [#allocation1], 0
    %s4 = sshllo.u32 0, 1
    %v5 = vld [vmem:[%s0] sm:%s4]
    %6 = vst [vmem:[#allocation3] sm:%s4] %v5
    %v7 = vld [vmem:[#allocation3] sm:$0x1]
    %vm8 = vcmask 130048
    %9 = vst.msk [vmem:[#allocation2] sm:$0x1] %vm8, %v7
    %v10 = vld [vmem:[#allocation3] sm:$0x1]
    %11 = vrot.lane.b32.xlu0 %v10, 112
    %v12 = vpop.permute.xlu0 %11
    %vm13 = vcmask 130048
    %s14 = scalar_lea.vmem [#allocation2], 1
    %15 = vst.msk [vmem:[%s14] sm:$0x1] %vm13, %v12
    %s17 = sshllo.u32 0, 2
    %v19 = vld [vmem:[#allocation2] sm:%s17]
    %s20 = sshllo.u32 0, 2
    %21 = vst [vmem:[#allocation0] sm:%s20] %v19
    %s23 = ssub.s32 32, 32
    %24 = vsyncadd [#allocation1], %s23
    %s26 = sshll.u32 [#allocation0], 4
    %s27 = int_to_ptr.vmem [resolvable:$true] %s26
    %29 = dma.vmem_to_hbm [thread:$0]  %s27, 32, %s1, [#allocation1]
    %30 = dma.done [#allocation1], 32
    %31 = vsyncpa [#allocation1], 1

// kernel: vector_quantize.1
$region0: #{vector_quantize.1}
  #allocation0 [shape = 'u32[]', space=smem, size = 0x4, offset = 0x4, fixed_abs, tag = 'smem constant byte address 0x4 - core index']
  #allocation1 [shape = 'u32[144,128]{1,0:T(1,128)}', space=vmem, size = 0x12000, scoped, tag = 'internal scratch']
  %s0 = inlined_call_operand.vmem [shape: f32[8,128], index: 0, kind: input, shape index: {}]
  %s1 = inlined_call_operand.vmem [shape: f32[16,8], index: 1, kind: input, shape index: {}]
  %s2 = inlined_call_operand.vmem [shape: f32[16,1], index: 2, kind: input, shape index: {}]
  %s3 = inlined_call_operand.vmem [shape: f32[8,128], index: 3, kind: output, shape index: {0}]
  %s4 = inlined_call_operand.vmem [shape: s32[1,128], index: 4, kind: output, shape index: {1}]
  %s5 = inlined_call_operand.hbm [shape: f32[1,1,1], index: 5, kind: output, shape index: {2}]
  %6 = xla_tuple %s3, %s4, %s5
  %s7 = sld [smem:[#allocation0]]
  $region46: #{vector_quantize.1} parent=0
    _
  %s9 = ssub.s32 1, %s7
  %s10 = scalar_select 0, %s9, %s7
  $region1: #{vector_quantize.1} parent=0
    #allocation2 [shape = 'u8[512]{0}', space=vmem, size = 0x400, scoped, tag = 'output window, operand 2, single buffered']
    #allocation3 [shape = 's32[1]{0}', space=sflag, size = 0x4, scoped, tag = 'scoped memory for vector_quantize.1']
    %11 = vsyncpa [#allocation3], 0
    // Predicated region
    $region2: #{vector_quantize.1} parent=1 // pred_check
      _
    $region3: #{vector_quantize.1} parent=1 // pred_check_branch
      %13 = sbr.rel (0) target = $region5
    $region4: #{vector_quantize.1} parent=1 // pred_region
      _
    $region5: #{vector_quantize.1} parent=1 // pred_fallthru
      _
    // Predicated region
    $region6: #{vector_quantize.1} parent=1 // pred_check
      _
    $region7: #{vector_quantize.1} parent=1 // pred_check_branch
      %15 = sbr.rel (0) target = $region9
    $region8: #{vector_quantize.1} parent=1 // pred_region
      _
    $region9: #{vector_quantize.1} parent=1 // pred_fallthru
      _
    // Predicated region
    $region10: #{vector_quantize.1} parent=1 // pred_check
      _
    $region11: #{vector_quantize.1} parent=1 // pred_check_branch
      %17 = sbr.rel (0) target = $region13
    $region12: #{vector_quantize.1} parent=1 // pred_region
      _
    $region13: #{vector_quantize.1} parent=1 // pred_fallthru
      _
    %v18 = vld [vmem:[%s0] sm:$0xff]
    %v19 = vld [vmem:[%s1] sm:$0xff]
    %v20 = vld [vmem:[%s1 + $0x8] sm:$0xff]
    %vm21 = vcmask 64512
    %v23 = vsel %vm21, %v19, 0
    %v26 = vsel %vm21, %v20, 0
    %28 = vmatprep.subr.mxu0 0.0
    %29 = vmatpush1.msra.mxu0 %v18
    %30 = vmatprep.subr.mxu0 0.0
    %31 = vmatpush1.msra.mxu0 0.0
    %32 = vmatprep.subr.mxu0 0.0
    %33 = vmatpush1.msra.mxu0 0.0
    %34 = vmatprep.subr.mxu0 0.0
    %35 = vmatpush1.msra.mxu0 0.0
    %36 = vmatprep.subr.mxu0 0.0
    %37 = vmatpush1.msra.mxu0 0.0
    %38 = vmatprep.subr.mxu0 0.0
    %39 = vmatpush1.msra.mxu0 0.0
    %40 = vmatprep.subr.mxu0 0.0
    %41 = vmatpush1.msra.mxu0 0.0
    %42 = vmatprep.subr.mxu0 0.0
    %43 = vmatpush1.msra.mxu0 0.0
    %44 = vmatprep.subr.mxu0 0.0
    %45 = vmatpush1.msra.mxu0 0.0
    %46 = vmatprep.subr.mxu0 0.0
    %47 = vmatpush1.msra.mxu0 0.0
    %48 = vmatprep.subr.mxu0 0.0
    %49 = vmatpush1.msra.mxu0 0.0
    %50 = vmatprep.subr.mxu0 0.0
    %51 = vmatpush1.msra.mxu0 0.0
    %52 = vmatprep.subr.mxu0 0.0
    %53 = vmatpush1.msra.mxu0 0.0
    %54 = vmatprep.subr.mxu0 0.0
    %55 = vmatpush1.msra.mxu0 0.0
    %56 = vmatprep.subr.mxu0 0.0
    %57 = vmatpush1.msra.mxu0 0.0
    %58 = vmatprep.subr.mxu0 0.0
    %59 = vmatpush1.msra.mxu0 0.0
    %60 = vmatprep.subr.mxu0 0.0
    %61 = vmatpush1.msra.mxu0 0.0
    %62 = vmatprep.subr.mxu0 0.0
    %63 = vmatpush1.msra.mxu0 0.0
    %64 = vmatprep.subr.mxu0 0.0
    %65 = vmatpush1.msra.mxu0 0.0
    %66 = vmatprep.subr.mxu0 0.0
    %67 = vmatpush1.msra.mxu0 0.0
    %68 = vmatprep.subr.mxu0 0.0
    %69 = vmatpush1.msra.mxu0 0.0
    %70 = vmatprep.subr.mxu0 0.0
    %71 = vmatpush1.msra.mxu0 0.0
    %72 = vmatprep.subr.mxu0 0.0
    %73 = vmatpush1.msra.mxu0 0.0
    %74 = vmatprep.subr.mxu0 0.0
    %75 = vmatpush1.msra.mxu0 0.0
    %76 = vmatprep.subr.mxu0 0.0
    %77 = vmatpush1.msra.mxu0 0.0
    %78 = vmatprep.subr.mxu0 0.0
    %79 = vmatpush1.msra.mxu0 0.0
    %80 = vmatprep.subr.mxu0 0.0
    %81 = vmatpush1.msra.mxu0 0.0
    %82 = vmatprep.subr.mxu0 0.0
    %83 = vmatpush1.msra.mxu0 0.0
    %84 = vmatprep.subr.mxu0 0.0
    %85 = vmatpush1.msra.mxu0 0.0
    %86 = vmatprep.subr.mxu0 0.0
    %87 = vmatpush1.msra.mxu0 0.0
    %88 = vmatprep.subr.mxu0 0.0
    %89 = vmatpush1.msra.mxu0 0.0
    %90 = vmatprep.subr.mxu0 0.0
    %91 = vmatpush1.msra.mxu0 0.0
    %92 = vmatprep.mubr.f32.mxu0 0.0
    %93 = vmatmul.mubr.f32.gmra.mrb[0].mxu0 %v23
    %v94 = vpop.f32.mrb[0].mxu0
    %v95 = vadd.f32 0.0, %v94
    %v96 = vpop.f32.mrb[0].mxu0
    %97 = vmatprep.mubr.f32.mxu0 0.0
    %98 = vmatmul.mubr.f32.gmra.mrb[0].mxu0 %v26
    %v99 = vpop.f32.mrb[0].mxu0
    %v100 = vadd.f32 0.0, %v99
    %v101 = vpop.f32.mrb[0].mxu0
    %102 = vdwg.mxu0
    %v103 = vld [vmem:[%s2] sm:$0xff]
    %v104 = vld [vmem:[%s2 + $0x8] sm:$0xff]
    %106 = vset.pattern.permute.xlu0 0
    %107 = vperm.xlu0 %106, %v103
    %v108 = vpop.permute.xlu0 %107
    %111 = vset.pattern.permute.xlu0 0
    %112 = vperm.xlu0 %111, %v104
    %v113 = vpop.permute.xlu0 %112
    %v115 = vsub.f32 %v108, %v95
    %v116 = vsub.f32 %v113, %v100
    %v117 = vmin.f32 %v115, %v116
    %v118 = vrot.slane %v117, 4
    %v119 = vmin.f32 %v117, %v118
    %v120 = vrot.slane %v119, 2
    %v121 = vmin.f32 %v119, %v120
    %v122 = vrot.slane %v121, 1
    %v123 = vmin.f32 %v121, %v122
    %v124 = vlaneseq
    %v125 = vshrl.u32 %v124, 7
    %v126 = vadd.s32 %v125, 8
    %vm127 = vcmp.le.f32.partialorder %v115, %v123
    %vm128 = vcmp.le.f32.partialorder %v116, %v123
    %v129 = vsel %vm127, %v125, 16
    %v130 = vsel %vm128, %v126, 16
    %vm131 = vcmp.lt.s32.totalorder %v129, %v130
    %v132 = vsel %vm131, %v129, %v130
    %v133 = vrot.slane %v132, 4
    %vm134 = vcmp.lt.s32.totalorder %v132, %v133
    %v135 = vsel %vm134, %v132, %v133
    %v136 = vrot.slane %v135, 2
    %vm137 = vcmp.lt.s32.totalorder %v135, %v136
    %v138 = vsel %vm137, %v135, %v136
    %v139 = vrot.slane %v138, 1
    %vm140 = vcmp.lt.s32.totalorder %v138, %v139
    %v141 = vsel %vm140, %v138, %v139
    %vm142 = vcmp.eq.s32.totalorder %v125, %v141
    %vm143 = vcmp.eq.s32.totalorder %v126, %v141
    %v144 = vsel %vm142, 1, 0
    %v145 = vsel %vm143, 1, 0
    %v146 = vcvt.s32.f32 %v144
    %v147 = vcvt.s32.f32 %v145
    %148 = vxpose.xlu0.b32.start [1/16] %v19, 128
    %149 = vxpose.xlu0.b32.cont [2/16] %v20, 128
    %150 = vxpose.xlu0.b32.cont [3/16] 0.0, 128
    %151 = vxpose.xlu0.b32.cont [4/16] 0.0, 128
    %152 = vxpose.xlu0.b32.cont [5/16] 0.0, 128
    %153 = vxpose.xlu0.b32.cont [6/16] 0.0, 128
    %154 = vxpose.xlu0.b32.cont [7/16] 0.0, 128
    %155 = vxpose.xlu0.b32.cont [8/16] 0.0, 128
    %156 = vxpose.xlu0.b32.cont [9/16] 0.0, 128
    %157 = vxpose.xlu0.b32.cont [10/16] 0.0, 128
    %158 = vxpose.xlu0.b32.cont [11/16] 0.0, 128
    %159 = vxpose.xlu0.b32.cont [12/16] 0.0, 128
    %160 = vxpose.xlu0.b32.cont [13/16] 0.0, 128
    %161 = vxpose.xlu0.b32.cont [14/16] 0.0, 128
    %162 = vxpose.xlu0.b32.cont [15/16] 0.0, 128
    %163 = vxpose.xlu0.b32.end [16/16] 0.0, 128
    %v164 = vpop.trf.xlu0
    %v165 = vpop.trf.xlu0
    %v166 = vpop.trf.xlu0
    %v167 = vpop.trf.xlu0
    %v168 = vpop.trf.xlu0
    %v169 = vpop.trf.xlu0
    %v170 = vpop.trf.xlu0
    %v171 = vpop.trf.xlu0
    %v172 = vpop.trf.xlu0
    %v173 = vpop.trf.xlu0
    %v174 = vpop.trf.xlu0
    %v175 = vpop.trf.xlu0
    %v176 = vpop.trf.xlu0
    %v177 = vpop.trf.xlu0
    %v178 = vpop.trf.xlu0
    %v179 = vpop.trf.xlu0
    %vm180 = vcmask 130048
    %v182 = vsel %vm180, %v164, 0
    %184 = vmatprep.subr.mxu0 0.0
    %185 = vmatpush1.msra.mxu0 %v146
    %186 = vmatprep.subr.mxu0 0.0
    %187 = vmatpush1.msra.mxu0 %v147
    %188 = vmatprep.subr.mxu0 0.0
    %189 = vmatpush1.msra.mxu0 0.0
    %190 = vmatprep.subr.mxu0 0.0
    %191 = vmatpush1.msra.mxu0 0.0
    %192 = vmatprep.subr.mxu0 0.0
    %193 = vmatpush1.msra.mxu0 0.0
    %194 = vmatprep.subr.mxu0 0.0
    %195 = vmatpush1.msra.mxu0 0.0
    %196 = vmatprep.subr.mxu0 0.0
    %197 = vmatpush1.msra.mxu0 0.0
    %198 = vmatprep.subr.mxu0 0.0
    %199 = vmatpush1.msra.mxu0 0.0
    %200 = vmatprep.subr.mxu0 0.0
    %201 = vmatpush1.msra.mxu0 0.0
    %202 = vmatprep.subr.mxu0 0.0
    %203 = vmatpush1.msra.mxu0 0.0
    %204 = vmatprep.subr.mxu0 0.0
    %205 = vmatpush1.msra.mxu0 0.0
    %206 = vmatprep.subr.mxu0 0.0
    %207 = vmatpush1.msra.mxu0 0.0
    %208 = vmatprep.subr.mxu0 0.0
    %209 = vmatpush1.msra.mxu0 0.0
    %210 = vmatprep.subr.mxu0 0.0
    %211 = vmatpush1.msra.mxu0 0.0
    %212 = vmatprep.subr.mxu0 0.0
    %213 = vmatpush1.msra.mxu0 0.0
    %214 = vmatprep.subr.mxu0 0.0
    %215 = vmatpush1.msra.mxu0 0.0
    %216 = vmatprep.subr.mxu0 0.0
    %217 = vmatpush1.msra.mxu0 0.0
    %218 = vmatprep.subr.mxu0 0.0
    %219 = vmatpush1.msra.mxu0 0.0
    %220 = vmatprep.subr.mxu0 0.0
    %221 = vmatpush1.msra.mxu0 0.0
    %222 = vmatprep.subr.mxu0 0.0
    %223 = vmatpush1.msra.mxu0 0.0
    %224 = vmatprep.subr.mxu0 0.0
    %225 = vmatpush1.msra.mxu0 0.0
    %226 = vmatprep.subr.mxu0 0.0
    %227 = vmatpush1.msra.mxu0 0.0
    %228 = vmatprep.subr.mxu0 0.0
    %229 = vmatpush1.msra.mxu0 0.0
    %230 = vmatprep.subr.mxu0 0.0
    %231 = vmatpush1.msra.mxu0 0.0
    %232 = vmatprep.subr.mxu0 0.0
    %233 = vmatpush1.msra.mxu0 0.0
    %234 = vmatprep.subr.mxu0 0.0
    %235 = vmatpush1.msra.mxu0 0.0
    %236 = vmatprep.subr.mxu0 0.0
    %237 = vmatpush1.msra.mxu0 0.0
    %238 = vmatprep.subr.mxu0 0.0
    %239 = vmatpush1.msra.mxu0 0.0
    %240 = vmatprep.subr.mxu0 0.0
    %241 = vmatpush1.msra.mxu0 0.0
    %242 = vmatprep.subr.mxu0 0.0
    %243 = vmatpush1.msra.mxu0 0.0
    %244 = vmatprep.subr.mxu0 0.0
    %245 = vmatpush1.msra.mxu0 0.0
    %246 = vmatprep.subr.mxu0 0.0
    %247 = vmatpush1.msra.mxu0 0.0
    %248 = vmatprep.mubr.f32.mxu0 0.0
    %249 = vmatmul.mubr.f32.gmra.mrb[0].mxu0 %v182
    %v250 = vpop.f32.mrb[0].mxu0
    %v251 = vadd.f32 0.0, %v250
    %v252 = vpop.f32.mrb[0].mxu0
    %253 = vdwg.mxu0
    %254 = vst [vmem:[%s3] sm:$0xff] %v251
    %255 = vst [vmem:[%s4] sm:$0x1] %v141
    %p256 = scmp.lt.s32.totalorder 0, 0
    // Predicated region
    $region14: #{vector_quantize.1} parent=1 // pred_check
      %p257 = pneg %p256
    $region15: #{vector_quantize.1} parent=1 // pred_check_branch
      %259 = sbr.rel (%p257) target = $region17
    $region16: #{vector_quantize.1} parent=1 // pred_region
      %v260 = vsub.f32 %v18, %v251
      %v261 = vmul.f32 %v260, %v260
      %262 = vadd.xlane.f32.xlu0 %v261
      %v263 = vpop.xlane.xlu0 %262
      %v264 = vrot.slane %v263, 4
      %v265 = vadd.f32 %v263, %v264
      %v266 = vrot.slane %v265, 2
      %v267 = vadd.f32 %v265, %v266
      %v268 = vrot.slane %v267, 1
      %v269 = vadd.f32 %v267, %v268
      %s270 = vtos %v269
      %v271 = vstv %s270
      %vm272 = vcmask 0
      %273 = vst.msk [vmem:[#allocation2] sm:$0x1] %vm272, %v271
    $region17: #{vector_quantize.1} parent=1 // pred_fallthru
      _
    %p274 = scmp.eq.s32.totalorder 0, 0
    // Predicated region
    $region18: #{vector_quantize.1} parent=1 // pred_check
      %p275 = pneg %p274
    $region19: #{vector_quantize.1} parent=1 // pred_check_branch
      %277 = sbr.rel (%p275) target = $region21
    $region20: #{vector_quantize.1} parent=1 // pred_region
      %v278 = vlaneseq
      %v279 = vand.u32 %v278, 127
      %s280 = smul.u32 0, 128
      %v281 = vstv %s280
      %v282 = vadd.s32 %v279, %v281
      %vm283 = vcmp.lt.s32.totalorder %v282, 32
      %v284 = vsub.f32 %v18, %v251
      %v285 = vsel %vm283, 1, 0
      %vm286 = vcmp.eq.s32.totalorder %v285, 1
      %v287 = vsel %vm286, %v284, 0.0
      %v288 = vmul.f32 %v287, %v287
      %289 = vadd.xlane.f32.xlu0 %v288
      %v290 = vpop.xlane.xlu0 %289
      %v291 = vrot.slane %v290, 4
      %v292 = vadd.f32 %v290, %v291
      %v293 = vrot.slane %v292, 2
      %v294 = vadd.f32 %v292, %v293
      %v295 = vrot.slane %v294, 1
      %v296 = vadd.f32 %v294, %v295
      %s297 = vtos %v296
      %v298 = vstv %s297
      %vm299 = vcmask 0
      %300 = vst.msk [vmem:[#allocation2] sm:$0x1] %vm299, %v298
    $region21: #{vector_quantize.1} parent=1 // pred_fallthru
      _
    // Predicated region
    $region22: #{vector_quantize.1} parent=1 // pred_check
      _
    $region23: #{vector_quantize.1} parent=1 // pred_check_branch
      %302 = sbr.rel (0) target = $region25
    $region24: #{vector_quantize.1} parent=1 // pred_region
      _
    $region25: #{vector_quantize.1} parent=1 // pred_fallthru
      _
    // Predicated region
    $region26: #{vector_quantize.1} parent=1 // pred_check
      _
    $region27: #{vector_quantize.1} parent=1 // pred_check_branch
      %304 = sbr.rel (0) target = $region29
    $region28: #{vector_quantize.1} parent=1 // pred_region
      _
    $region29: #{vector_quantize.1} parent=1 // pred_fallthru
      _
    // Predicated region
    $region30: #{vector_quantize.1} parent=1 // pred_check
      _
    $region31: #{vector_quantize.1} parent=1 // pred_check_branch
      %306 = sbr.rel (0) target = $region33
    $region32: #{vector_quantize.1} parent=1 // pred_region
      %s308 = ssub.s32 16, 16
      %309 = vsyncadd [#allocation3], %s308
      %s311 = sshll.u32 [#allocation2], 4
      %s312 = int_to_ptr.vmem [resolvable:$true] %s311
      %314 = dma.vmem_to_hbm [thread:$0]  %s312, 16, %s5, [#allocation3]
    $region33: #{vector_quantize.1} parent=1 // pred_fallthru
      _
    // Predicated region
    $region34: #{vector_quantize.1} parent=1 // pred_check
      _
    $region35: #{vector_quantize.1} parent=1 // pred_check_branch
      %316 = sbr.rel (0) target = $region37
    $region36: #{vector_quantize.1} parent=1 // pred_region
      _
    $region37: #{vector_quantize.1} parent=1 // pred_fallthru
      _
    // Predicated region
    $region38: #{vector_quantize.1} parent=1 // pred_check
      _
    $region39: #{vector_quantize.1} parent=1 // pred_check_branch
      %318 = sbr.rel (0) target = $region41
    $region40: #{vector_quantize.1} parent=1 // pred_region
      _
    $region41: #{vector_quantize.1} parent=1 // pred_fallthru
      _
    // Predicated region
    $region42: #{vector_quantize.1} parent=1 // pred_check
      _
    $region43: #{vector_quantize.1} parent=1 // pred_check_branch
      %320 = sbr.rel (0) target = $region45
    $region44: #{vector_quantize.1} parent=1 // pred_region
      %321 = dma.done [#allocation3], 16
    $region45: #{vector_quantize.1} parent=1 // pred_fallthru
      _
    %322 = vsyncpa [#allocation3], 1

</llo_original>
